<compile_context>
chip_gen: v5e
topology: v5e:2x2
jax: 0.10.0
libtpu: 0.0.40
codegen_flags: <defaults>
</compile_context>

<pallas_src>
import jax
import jax.numpy as jnp
from jax.experimental import pallas as pl
from jax.experimental.pallas import tpu as pltpu

_LANE = 128
_SUBLANE = 8


def _round_up(x, m):
    return ((x + m - 1) // m) * m


def _leaky_relu(x, negative_slope=0.01):
    # Matches torch.nn.LeakyReLU default slope.
    return jnp.where(x >= 0, x, negative_slope * x)


def init_linear(key, fan_in, fan_out):
    # Mirrors torch.nn.Linear default init: U(-1/sqrt(fan_in), 1/sqrt(fan_in)).
    kw, kb = jax.random.split(key)
    bound = 1.0 / jnp.sqrt(jnp.float32(fan_in))
    # Stored transposed for y = x @ W + b  (W: (fan_in, fan_out)).
    w = jax.random.uniform(kw, (fan_in, fan_out), jnp.float32, -bound, bound)
    b = jax.random.uniform(kb, (1, fan_out), jnp.float32, -bound, bound)
    return w, b


def pack_params(params, embedding_dim, num_subjects):
    """Fold fc + model[0] into one linear; pack weights/biases into two
    zero-padded, lane-dense slabs (2 parameter DMAs total)."""
    wfc, bfc, w1, b1, w2, b2, w3, b3 = params
    E = embedding_dim
    H1, H2, S = E // 2, E // 4, num_subjects

    # Exact algebraic fold (only f32 reassociation-level differences).
    w_fused = wfc @ w1              # (4E, E//2)
    b_fused = bfc @ w1 + b1         # (1,  E//2)

    NPAD = _round_up(max(H1, H2, S), _LANE)        # lane-dense fan_out
    KPAD = _round_up(max(4 * E, NPAD), _SUBLANE)   # common (padded) fan_in

    w_pack = jnp.zeros((3, KPAD, NPAD), jnp.float32)
    w_pack = w_pack.at[0, :4 * E, :H1].set(w_fused)
    w_pack = w_pack.at[1, :H1, :H2].set(w2)
    w_pack = w_pack.at[2, :H2, :S].set(w3)

    b_pack = jnp.zeros((3, 1, NPAD), jnp.float32)
    b_pack = b_pack.at[0, 0, :H1].set(b_fused[0])
    b_pack = b_pack.at[1, 0, :H2].set(b2[0])
    b_pack = b_pack.at[2, 0, :S].set(b3[0])
    return w_pack, b_pack


def adversarial_forward(embeddings1, embeddings2, w_pack, b_pack, modalities,
                        num_subjects):
    e1a = embeddings1[modalities[0]]
    e1b = embeddings1[modalities[1]]
    e2a = embeddings2[modalities[0]]
    e2b = embeddings2[modalities[1]]

    B, E = e1a.shape
    _, KPAD, NPAD = w_pack.shape
    S = num_subjects
    assert E % _SUBLANE == 0, "embedding_dim must be a multiple of 8"

    # Batch tiling: single whole-array block at small B; 128-row parallel
    # tiles (megacore-shardable, pipelined) once B grows.
    if B > _LANE:
        tile_b = _LANE
        b_pad = _round_up(B, tile_b)
        if b_pad != B:
            pad = lambda x: jnp.pad(x, ((0, b_pad - B), (0, 0)))
            e1a, e1b, e2a, e2b = pad(e1a), pad(e1b), pad(e2a), pad(e2b)
    else:
        tile_b = B
        b_pad = B
    grid = (b_pad // tile_b,)

    def kernel(e1a_ref, e1b_ref, e2a_ref, e2b_ref, w_ref, b_ref, out_ref):
        # Fused (fc + Linear(E -> E//2)): in-kernel "concat" via four partial
        # matmuls against static row-slices of the fused weight.
        h = jnp.dot(e1a_ref[...], w_ref[0, 0 * E:1 * E, :],
                    preferred_element_type=jnp.float32)
        h = h + jnp.dot(e1b_ref[...], w_ref[0, 1 * E:2 * E, :],
                        preferred_element_type=jnp.float32)
        h = h + jnp.dot(e2a_ref[...], w_ref[0, 2 * E:3 * E, :],
                        preferred_element_type=jnp.float32)
        h = h + jnp.dot(e2b_ref[...], w_ref[0, 3 * E:4 * E, :],
                        preferred_element_type=jnp.float32)
        h = _leaky_relu(h + b_ref[0])

        # model[2]: Dropout -> identity in eval/inference mode.
        # TODO(synk): training-mode dropout (pltpu.prng_*) not implemented.

        # model[3..4]: Linear(E//2 -> E//4) + LeakyReLU (lane-padded to 128).
        h = _leaky_relu(jnp.dot(h, w_ref[1, :NPAD, :],
                                preferred_element_type=jnp.float32) + b_ref[1])

        # model[5..6]: Linear(E//4 -> S) + Sigmoid. Lane-dense (tile_b, 128)
        # unmasked store; real S columns sliced in the wrapper.
        h = jnp.dot(h, w_ref[2, :NPAD, :],
                    preferred_element_type=jnp.float32) + b_ref[2]
        out_ref[...] = jax.nn.sigmoid(h).astype(out_ref.dtype)

    emb_spec = pl.BlockSpec((tile_b, E), lambda i: (i, 0))
    out = pl.pallas_call(
        kernel,
        out_shape=jax.ShapeDtypeStruct((b_pad, NPAD), jnp.float32),
        grid=grid,
        in_specs=[emb_spec, emb_spec, emb_spec, emb_spec,
                  pl.BlockSpec((3, KPAD, NPAD), lambda i: (0, 0, 0)),
                  pl.BlockSpec((3, 1, NPAD), lambda i: (0, 0, 0))],
        out_specs=pl.BlockSpec((tile_b, NPAD), lambda i: (i, 0)),
        compiler_params=pltpu.CompilerParams(
            dimension_semantics=("parallel",)),
    )(e1a, e1b, e2a, e2b, w_pack, b_pack)
    return out[:B, :S]


def reference_forward(embeddings1, embeddings2, params, modalities):
    # Pure-JAX reference mirroring the PyTorch module (unfused layers).
    wfc, bfc, w1, b1, w2, b2, w3, b3 = params
    x = jnp.concatenate(
        (embeddings1[modalities[0]], embeddings1[modalities[1]],
         embeddings2[modalities[0]], embeddings2[modalities[1]]), axis=1)
    h = x @ wfc + bfc
    h = _leaky_relu(h @ w1 + b1)
    h = _leaky_relu(h @ w2 + b2)
    return jax.nn.sigmoid(h @ w3 + b3)


if __name__ == "__main__":
    # Small, deterministic example config.
    batch = 2
    embedding_dim = 32
    num_subjects = 4
    modalities = ("acc", "gyro")

    key = jax.random.PRNGKey(0)
    k_e1a, k_e1b, k_e2a, k_e2b, k_fc, k_l1, k_l2, k_l3 = jax.random.split(key, 8)

    embeddings1 = {
        modalities[0]: jax.random.normal(k_e1a, (batch, embedding_dim), jnp.float32),
        modalities[1]: jax.random.normal(k_e1b, (batch, embedding_dim), jnp.float32),
    }
    embeddings2 = {
        modalities[0]: jax.random.normal(k_e2a, (batch, embedding_dim), jnp.float32),
        modalities[1]: jax.random.normal(k_e2b, (batch, embedding_dim), jnp.float32),
    }

    # Deterministic parameter init (shapes follow the module's __init__).
    wfc, bfc = init_linear(k_fc, embedding_dim * 4, embedding_dim)
    w1, b1 = init_linear(k_l1, embedding_dim, embedding_dim // 2)
    w2, b2 = init_linear(k_l2, embedding_dim // 2, embedding_dim // 4)
    w3, b3 = init_linear(k_l3, embedding_dim // 4, num_subjects)
    params = (wfc, bfc, w1, b1, w2, b2, w3, b3)

    # One-time parameter prep: fold + pack.
    w_pack, b_pack = pack_params(params, embedding_dim, num_subjects)

    out = adversarial_forward(embeddings1, embeddings2, w_pack, b_pack,
                              modalities, num_subjects)
    out = jax.block_until_ready(out)

    # Sanity checks: shape, sigmoid range, and match vs pure-JAX reference.
    ref = reference_forward(embeddings1, embeddings2, params, modalities)
    assert out.shape == (batch, num_subjects)
    assert bool(jnp.all((out >= 0.0) & (out <= 1.0)))
    assert bool(jnp.allclose(out, ref, rtol=1e-5, atol=1e-5)), "mismatch vs reference"

    print("KERNEL_OK")
</pallas_src>

<mosaic_0001>
module attributes {stable_mosaic.version = 11 : i64} {
  func.func @kernel(%arg0: i32, %arg1: memref<2x32xf32, #tpu.memory_space<vmem>>, %arg2: memref<2x32xf32, #tpu.memory_space<vmem>>, %arg3: memref<2x32xf32, #tpu.memory_space<vmem>>, %arg4: memref<2x32xf32, #tpu.memory_space<vmem>>, %arg5: memref<3x128x128xf32, #tpu.memory_space<vmem>>, %arg6: memref<3x1x128xf32, #tpu.memory_space<vmem>>, %arg7: memref<2x128xf32, #tpu.memory_space<vmem>>) attributes {dimension_semantics = [#tpu.dimension_semantics<parallel>], iteration_bounds = array<i64: 1>, scalar_prefetch = 0 : i64, scratch_operands = 0 : i64, tpu.core_type = #tpu.core_type<tc>, window_params = [{transform_indices = @transform_0, window_bounds = array<i64: 2, 32>}, {transform_indices = @transform_1, window_bounds = array<i64: 2, 32>}, {transform_indices = @transform_2, window_bounds = array<i64: 2, 32>}, {transform_indices = @transform_3, window_bounds = array<i64: 2, 32>}, {pipeline_mode = #tpu.pipeline_mode<synchronous>, transform_indices = @transform_4, window_bounds = array<i64: 3, 128, 128>}, {pipeline_mode = #tpu.pipeline_mode<synchronous>, transform_indices = @transform_5, window_bounds = array<i64: 3, 1, 128>}, {transform_indices = @transform_6, window_bounds = array<i64: 2, 128>}]} {
    %c0 = arith.constant 0 : index
    %c0_0 = arith.constant 0 : index
    %0 = vector.load %arg1[%c0, %c0_0] : memref<2x32xf32, #tpu.memory_space<vmem>>, vector<2x32xf32>
    %c0_1 = arith.constant 0 : index
    %c0_2 = arith.constant 0 : index
    %c0_3 = arith.constant 0 : index
    %1 = vector.load %arg5[%c0_1, %c0_2, %c0_3] : memref<3x128x128xf32, #tpu.memory_space<vmem>>, vector<1x32x128xf32>
    %2 = vector.shape_cast %1 : vector<1x32x128xf32> to vector<32x128xf32>
    %cst = arith.constant dense<0.000000e+00> : vector<2x128xf32>
    %3 = tpu.matmul %0, %2, %cst {dimension_numbers = #tpu.dot_dimension_numbers<[1], [0], [0], [1], [0, 0, 1, 1], [], []>} : vector<2x32xf32>, vector<32x128xf32>, vector<2x128xf32> -> vector<2x128xf32>
    %c0_4 = arith.constant 0 : index
    %c0_5 = arith.constant 0 : index
    %4 = vector.load %arg2[%c0_4, %c0_5] : memref<2x32xf32, #tpu.memory_space<vmem>>, vector<2x32xf32>
    %c0_6 = arith.constant 0 : index
    %c32 = arith.constant 32 : index
    %c0_7 = arith.constant 0 : index
    %5 = vector.load %arg5[%c0_6, %c32, %c0_7] : memref<3x128x128xf32, #tpu.memory_space<vmem>>, vector<1x32x128xf32>
    %6 = vector.shape_cast %5 : vector<1x32x128xf32> to vector<32x128xf32>
    %cst_8 = arith.constant dense<0.000000e+00> : vector<2x128xf32>
    %7 = tpu.matmul %4, %6, %cst_8 {dimension_numbers = #tpu.dot_dimension_numbers<[1], [0], [0], [1], [0, 0, 1, 1], [], []>} : vector<2x32xf32>, vector<32x128xf32>, vector<2x128xf32> -> vector<2x128xf32>
    %8 = arith.addf %3, %7 : vector<2x128xf32>
    %c0_9 = arith.constant 0 : index
    %c0_10 = arith.constant 0 : index
    %9 = vector.load %arg3[%c0_9, %c0_10] : memref<2x32xf32, #tpu.memory_space<vmem>>, vector<2x32xf32>
    %c0_11 = arith.constant 0 : index
    %c64 = arith.constant 64 : index
    %c0_12 = arith.constant 0 : index
    %10 = vector.load %arg5[%c0_11, %c64, %c0_12] : memref<3x128x128xf32, #tpu.memory_space<vmem>>, vector<1x32x128xf32>
    %11 = vector.shape_cast %10 : vector<1x32x128xf32> to vector<32x128xf32>
    %cst_13 = arith.constant dense<0.000000e+00> : vector<2x128xf32>
    %12 = tpu.matmul %9, %11, %cst_13 {dimension_numbers = #tpu.dot_dimension_numbers<[1], [0], [0], [1], [0, 0, 1, 1], [], []>} : vector<2x32xf32>, vector<32x128xf32>, vector<2x128xf32> -> vector<2x128xf32>
    %13 = arith.addf %8, %12 : vector<2x128xf32>
    %c0_14 = arith.constant 0 : index
    %c0_15 = arith.constant 0 : index
    %14 = vector.load %arg4[%c0_14, %c0_15] : memref<2x32xf32, #tpu.memory_space<vmem>>, vector<2x32xf32>
    %c0_16 = arith.constant 0 : index
    %c96 = arith.constant 96 : index
    %c0_17 = arith.constant 0 : index
    %15 = vector.load %arg5[%c0_16, %c96, %c0_17] : memref<3x128x128xf32, #tpu.memory_space<vmem>>, vector<1x32x128xf32>
    %16 = vector.shape_cast %15 : vector<1x32x128xf32> to vector<32x128xf32>
    %cst_18 = arith.constant dense<0.000000e+00> : vector<2x128xf32>
    %17 = tpu.matmul %14, %16, %cst_18 {dimension_numbers = #tpu.dot_dimension_numbers<[1], [0], [0], [1], [0, 0, 1, 1], [], []>} : vector<2x32xf32>, vector<32x128xf32>, vector<2x128xf32> -> vector<2x128xf32>
    %18 = arith.addf %13, %17 : vector<2x128xf32>
    %c0_19 = arith.constant 0 : index
    %c0_20 = arith.constant 0 : index
    %c0_21 = arith.constant 0 : index
    %19 = vector.load %arg6[%c0_19, %c0_20, %c0_21] : memref<3x1x128xf32, #tpu.memory_space<vmem>>, vector<1x1x128xf32>
    %20 = vector.shape_cast %19 : vector<1x1x128xf32> to vector<1x128xf32>
    %21 = vector.broadcast %20 : vector<1x128xf32> to vector<2x128xf32>
    %22 = arith.addf %18, %21 : vector<2x128xf32>
    %cst_22 = arith.constant 0.000000e+00 : f32
    %23 = vector.broadcast %cst_22 : f32 to vector<2x128xf32>
    %24 = arith.cmpf oge, %22, %23 : vector<2x128xf32>
    %cst_23 = arith.constant 0.00999999977 : f32
    %25 = vector.broadcast %cst_23 : f32 to vector<2x128xf32>
    %26 = arith.mulf %25, %22 : vector<2x128xf32>
    %27 = arith.select %24, %22, %26 : vector<2x128xi1>, vector<2x128xf32>
    %c1 = arith.constant 1 : index
    %c0_24 = arith.constant 0 : index
    %c0_25 = arith.constant 0 : index
    %28 = vector.load %arg5[%c1, %c0_24, %c0_25] : memref<3x128x128xf32, #tpu.memory_space<vmem>>, vector<1x128x128xf32>
    %29 = vector.shape_cast %28 : vector<1x128x128xf32> to vector<128x128xf32>
    %cst_26 = arith.constant dense<0.000000e+00> : vector<2x128xf32>
    %30 = tpu.matmul %27, %29, %cst_26 {dimension_numbers = #tpu.dot_dimension_numbers<[1], [0], [0], [1], [0, 0, 1, 1], [], []>} : vector<2x128xf32>, vector<128x128xf32>, vector<2x128xf32> -> vector<2x128xf32>
    %c1_27 = arith.constant 1 : index
    %c0_28 = arith.constant 0 : index
    %c0_29 = arith.constant 0 : index
    %31 = vector.load %arg6[%c1_27, %c0_28, %c0_29] : memref<3x1x128xf32, #tpu.memory_space<vmem>>, vector<1x1x128xf32>
    %32 = vector.shape_cast %31 : vector<1x1x128xf32> to vector<1x128xf32>
    %33 = vector.broadcast %32 : vector<1x128xf32> to vector<2x128xf32>
    %34 = arith.addf %30, %33 : vector<2x128xf32>
    %cst_30 = arith.constant 0.000000e+00 : f32
    %35 = vector.broadcast %cst_30 : f32 to vector<2x128xf32>
    %36 = arith.cmpf oge, %34, %35 : vector<2x128xf32>
    %cst_31 = arith.constant 0.00999999977 : f32
    %37 = vector.broadcast %cst_31 : f32 to vector<2x128xf32>
    %38 = arith.mulf %37, %34 : vector<2x128xf32>
    %39 = arith.select %36, %34, %38 : vector<2x128xi1>, vector<2x128xf32>
    %c2 = arith.constant 2 : index
    %c0_32 = arith.constant 0 : index
    %c0_33 = arith.constant 0 : index
    %40 = vector.load %arg5[%c2, %c0_32, %c0_33] : memref<3x128x128xf32, #tpu.memory_space<vmem>>, vector<1x128x128xf32>
    %41 = vector.shape_cast %40 : vector<1x128x128xf32> to vector<128x128xf32>
    %cst_34 = arith.constant dense<0.000000e+00> : vector<2x128xf32>
    %42 = tpu.matmul %39, %41, %cst_34 {dimension_numbers = #tpu.dot_dimension_numbers<[1], [0], [0], [1], [0, 0, 1, 1], [], []>} : vector<2x128xf32>, vector<128x128xf32>, vector<2x128xf32> -> vector<2x128xf32>
    %c2_35 = arith.constant 2 : index
    %c0_36 = arith.constant 0 : index
    %c0_37 = arith.constant 0 : index
    %43 = vector.load %arg6[%c2_35, %c0_36, %c0_37] : memref<3x1x128xf32, #tpu.memory_space<vmem>>, vector<1x1x128xf32>
    %44 = vector.shape_cast %43 : vector<1x1x128xf32> to vector<1x128xf32>
    %45 = vector.broadcast %44 : vector<1x128xf32> to vector<2x128xf32>
    %46 = arith.addf %42, %45 : vector<2x128xf32>
    %47 = arith.negf %46 : vector<2x128xf32>
    %48 = math.exp %47 : vector<2x128xf32>
    %cst_38 = arith.constant 1.000000e+00 : f32
    %49 = vector.broadcast %cst_38 : f32 to vector<2x128xf32>
    %50 = arith.addf %49, %48 : vector<2x128xf32>
    %51 = arith.divf %49, %50 : vector<2x128xf32>
    %c0_39 = arith.constant 0 : index
    %c0_40 = arith.constant 0 : index
    %52 = vector.load %arg7[%c0_39, %c0_40] : memref<2x128xf32, #tpu.memory_space<vmem>>, vector<2x128xf32>
    tpu.vector_store %arg7[%c0_39, %c0_40], %51 {strides = array<i32>} : memref<2x128xf32, #tpu.memory_space<vmem>>, vector<2x128xf32>,
    return
  }
  func.func @transform_0(%arg0: i32) -> (i32, i32) {
    %c0_i32 = arith.constant 0 : i32
    %c0_i32_0 = arith.constant 0 : i32
    return %arg0, %c0_i32 : i32, i32
  }
  func.func @transform_1(%arg0: i32) -> (i32, i32) {
    %c0_i32 = arith.constant 0 : i32
    %c0_i32_0 = arith.constant 0 : i32
    return %arg0, %c0_i32 : i32, i32
  }
  func.func @transform_2(%arg0: i32) -> (i32, i32) {
    %c0_i32 = arith.constant 0 : i32
    %c0_i32_0 = arith.constant 0 : i32
    return %arg0, %c0_i32 : i32, i32
  }
  func.func @transform_3(%arg0: i32) -> (i32, i32) {
    %c0_i32 = arith.constant 0 : i32
    %c0_i32_0 = arith.constant 0 : i32
    return %arg0, %c0_i32 : i32, i32
  }
  func.func @transform_4(%arg0: i32) -> (i32, i32, i32) {
    %c0_i32 = arith.constant 0 : i32
    %c0_i32_0 = arith.constant 0 : i32
    %c0_i32_1 = arith.constant 0 : i32
    %c0_i32_2 = arith.constant 0 : i32
    return %c0_i32, %c0_i32_0, %c0_i32_1 : i32, i32, i32
  }
  func.func @transform_5(%arg0: i32) -> (i32, i32, i32) {
    %c0_i32 = arith.constant 0 : i32
    %c0_i32_0 = arith.constant 0 : i32
    %c0_i32_1 = arith.constant 0 : i32
    %c0_i32_2 = arith.constant 0 : i32
    return %c0_i32, %c0_i32_0, %c0_i32_1 : i32, i32, i32
  }
  func.func @transform_6(%arg0: i32) -> (i32, i32) {
    %c0_i32 = arith.constant 0 : i32
    %c0_i32_0 = arith.constant 0 : i32
    return %arg0, %c0_i32 : i32, i32
  }
}

</mosaic_0001>

<llo_original>
// kernel: tpu_custom_call.1
$region0: #{tpu_custom_call.1}
  #allocation0 [shape = 'u32[]', space=smem, size = 0x4, offset = 0x4, fixed_abs, tag = 'smem constant byte address 0x4 - core index']
  #allocation1 [shape = 'u32[72,128]{1,0:T(1,128)}', space=vmem, size = 0x9000, scoped, tag = 'internal scratch']
  %s0 = inlined_call_operand.hbm [shape: f32[2,32], index: 0, kind: input, shape index: {}]
  %s1 = inlined_call_operand.hbm [shape: f32[2,32], index: 1, kind: input, shape index: {}]
  %s2 = inlined_call_operand.hbm [shape: f32[2,32], index: 2, kind: input, shape index: {}]
  %s3 = inlined_call_operand.hbm [shape: f32[2,32], index: 3, kind: input, shape index: {}]
  %s4 = inlined_call_operand.hbm [shape: f32[3,128,128], index: 4, kind: input, shape index: {}]
  %s5 = inlined_call_operand.vmem [shape: f32[3,1,128], index: 5, kind: input, shape index: {}]
  %s6 = inlined_call_operand.hbm [shape: f32[2,128], index: 6, kind: output, shape index: {}]
  %s7 = sld [smem:[#allocation0]]
  $region54: #{tpu_custom_call.1} parent=0
    _
  %s9 = ssub.s32 1, %s7
  %s10 = scalar_select 0, %s9, %s7
  $region1: #{tpu_custom_call.1} parent=0
    #allocation2 [shape = 'u8[1024]{0}', space=vmem, size = 0x400, scoped, tag = 'input window, operand 0, single buffered']
    #allocation3 [shape = 's32[1]{0}', space=sflag, size = 0x4, scoped, tag = 'scoped memory for tpu_custom_call.1']
    #allocation4 [shape = 's32[1]{0}', space=sflag, size = 0x4, scoped, tag = 'scoped memory for tpu_custom_call.1']
    #allocation5 [shape = 'u8[1024]{0}', space=vmem, size = 0x400, scoped, tag = 'input window, operand 1, single buffered']
    #allocation6 [shape = 's32[1]{0}', space=sflag, size = 0x4, scoped, tag = 'scoped memory for tpu_custom_call.1']
    #allocation7 [shape = 'u8[1024]{0}', space=vmem, size = 0x400, scoped, tag = 'input window, operand 2, single buffered']
    #allocation8 [shape = 'u8[1024]{0}', space=vmem, size = 0x400, scoped, tag = 'input window, operand 3, single buffered']
    #allocation9 [shape = 's32[1]{0}', space=sflag, size = 0x4, scoped, tag = 'scoped memory for tpu_custom_call.1']
    #allocation10 [shape = 'u8[196608]{0}', space=vmem, size = 0x30000, scoped, tag = 'input window, operand 4, single buffered']
    #allocation11 [shape = 'u8[1024]{0}', space=vmem, size = 0x400, scoped, tag = 'output window, operand 0, single buffered']
    %11 = vsyncpa [#allocation3], 0
    %12 = vsyncpa [#allocation6], 0
    %13 = vsyncpa [#allocation9], 0
    %14 = vsyncpa [#allocation4], 0
    // Predicated region
    $region2: #{tpu_custom_call.1} parent=1 // pred_check
      _
    $region3: #{tpu_custom_call.1} parent=1 // pred_check_branch
      %16 = sbr.rel (0) target = $region5
    $region4: #{tpu_custom_call.1} parent=1 // pred_region
      %18 = vsyncadd [#allocation3], 0
      %s20 = sshll.u32 %s0, 4
      %s21 = int_to_ptr.hbm [resolvable:$true] %s20
      %s22 = sshll.u32 [#allocation2], 4
      %s23 = int_to_ptr.vmem [resolvable:$true] %s22
      %25 = dma.hbm_to_vmem [thread:$0]  %s21, 32, %s23, [#allocation3]
    $region5: #{tpu_custom_call.1} parent=1 // pred_fallthru
      _
    // Predicated region
    $region6: #{tpu_custom_call.1} parent=1 // pred_check
      _
    $region7: #{tpu_custom_call.1} parent=1 // pred_check_branch
      %27 = sbr.rel (0) target = $region9
    $region8: #{tpu_custom_call.1} parent=1 // pred_region
      %29 = vsyncadd [#allocation6], 0
      %s31 = sshll.u32 %s1, 4
      %s32 = int_to_ptr.hbm [resolvable:$true] %s31
      %s33 = sshll.u32 [#allocation5], 4
      %s34 = int_to_ptr.vmem [resolvable:$true] %s33
      %36 = dma.hbm_to_vmem [thread:$0]  %s32, 32, %s34, [#allocation6]
    $region9: #{tpu_custom_call.1} parent=1 // pred_fallthru
      _
    // Predicated region
    $region10: #{tpu_custom_call.1} parent=1 // pred_check
      _
    $region11: #{tpu_custom_call.1} parent=1 // pred_check_branch
      %38 = sbr.rel (0) target = $region13
    $region12: #{tpu_custom_call.1} parent=1 // pred_region
      %40 = vsyncadd [#allocation6], 0
      %s42 = sshll.u32 %s2, 4
      %s43 = int_to_ptr.hbm [resolvable:$true] %s42
      %s44 = sshll.u32 [#allocation7], 4
      %s45 = int_to_ptr.vmem [resolvable:$true] %s44
      %47 = dma.hbm_to_vmem [thread:$0]  %s43, 32, %s45, [#allocation6]
    $region13: #{tpu_custom_call.1} parent=1 // pred_fallthru
      _
    // Predicated region
    $region14: #{tpu_custom_call.1} parent=1 // pred_check
      _
    $region15: #{tpu_custom_call.1} parent=1 // pred_check_branch
      %49 = sbr.rel (0) target = $region17
    $region16: #{tpu_custom_call.1} parent=1 // pred_region
      %51 = vsyncadd [#allocation9], 0
      %s53 = sshll.u32 %s3, 4
      %s54 = int_to_ptr.hbm [resolvable:$true] %s53
      %s55 = sshll.u32 [#allocation8], 4
      %s56 = int_to_ptr.vmem [resolvable:$true] %s55
      %58 = dma.hbm_to_vmem [thread:$0]  %s54, 32, %s56, [#allocation9]
    $region17: #{tpu_custom_call.1} parent=1 // pred_fallthru
      _
    // Predicated region
    $region18: #{tpu_custom_call.1} parent=1 // pred_check
      _
    $region19: #{tpu_custom_call.1} parent=1 // pred_check_branch
      %60 = sbr.rel (0) target = $region21
    $region20: #{tpu_custom_call.1} parent=1 // pred_region
      %62 = vsyncadd [#allocation9], 0
      %s63 = sshll.u32 %s4, 4
      %s64 = int_to_ptr.hbm [resolvable:$true] %s63
      %s65 = sshll.u32 [#allocation10], 4
      %s66 = int_to_ptr.vmem [resolvable:$true] %s65
      %71 = dma.hbm_to_vmem [thread:$0]  %s64, 6144, %s66, [#allocation9], 128, 128, 8
    $region21: #{tpu_custom_call.1} parent=1 // pred_fallthru
      _
    // Predicated region
    $region22: #{tpu_custom_call.1} parent=1 // pred_check
      _
    $region23: #{tpu_custom_call.1} parent=1 // pred_check_branch
      %73 = sbr.rel (0) target = $region25
    $region24: #{tpu_custom_call.1} parent=1 // pred_region
      _
    $region25: #{tpu_custom_call.1} parent=1 // pred_fallthru
      _
    // Predicated region
    $region26: #{tpu_custom_call.1} parent=1 // pred_check
      _
    $region27: #{tpu_custom_call.1} parent=1 // pred_check_branch
      %75 = sbr.rel (0) target = $region29
    $region28: #{tpu_custom_call.1} parent=1 // pred_region
      %77 = dma.done [#allocation3], 32
    $region29: #{tpu_custom_call.1} parent=1 // pred_fallthru
      _
    // Predicated region
    $region30: #{tpu_custom_call.1} parent=1 // pred_check
      _
    $region31: #{tpu_custom_call.1} parent=1 // pred_check_branch
      %79 = sbr.rel (0) target = $region33
    $region32: #{tpu_custom_call.1} parent=1 // pred_region
      %81 = dma.done [#allocation6], 32
    $region33: #{tpu_custom_call.1} parent=1 // pred_fallthru
      _
    // Predicated region
    $region34: #{tpu_custom_call.1} parent=1 // pred_check
      _
    $region35: #{tpu_custom_call.1} parent=1 // pred_check_branch
      %83 = sbr.rel (0) target = $region37
    $region36: #{tpu_custom_call.1} parent=1 // pred_region
      %85 = dma.done [#allocation6], 32
    $region37: #{tpu_custom_call.1} parent=1 // pred_fallthru
      _
    // Predicated region
    $region38: #{tpu_custom_call.1} parent=1 // pred_check
      _
    $region39: #{tpu_custom_call.1} parent=1 // pred_check_branch
      %87 = sbr.rel (0) target = $region41
    $region40: #{tpu_custom_call.1} parent=1 // pred_region
      %89 = dma.done [#allocation9], 32
    $region41: #{tpu_custom_call.1} parent=1 // pred_fallthru
      _
    // Predicated region
    $region42: #{tpu_custom_call.1} parent=1 // pred_check
      _
    $region43: #{tpu_custom_call.1} parent=1 // pred_check_branch
      %91 = sbr.rel (0) target = $region45
    $region44: #{tpu_custom_call.1} parent=1 // pred_region
      %93 = dma.done [#allocation9], 6144
    $region45: #{tpu_custom_call.1} parent=1 // pred_fallthru
      _
    %v94 = vld [vmem:[#allocation2] sm:$0x3]
    %v95 = vld [vmem:[#allocation10] sm:$0xff]
    %v96 = vld [vmem:[#allocation10 + $0x8] sm:$0xff]
    %v97 = vld [vmem:[#allocation10 + $0x10] sm:$0xff]
    %v98 = vld [vmem:[#allocation10 + $0x18] sm:$0xff]
    %v99 = vld [vmem:[#allocation5] sm:$0x3]
    %v100 = vld [vmem:[#allocation10 + $0x20] sm:$0xff]
    %v101 = vld [vmem:[#allocation10 + $0x28] sm:$0xff]
    %v102 = vld [vmem:[#allocation10 + $0x30] sm:$0xff]
    %v103 = vld [vmem:[#allocation10 + $0x38] sm:$0xff]
    %vm104 = vcmask 261120
    %v106 = vsel %vm104, %v99, 0
    %108 = vmatpush.msra.mxu0 0.0
    %109 = vmatpush.msra.mxu0 0.0
    %110 = vmatpush.msra.mxu0 0.0
    %111 = vmatpush.msra.mxu0 0.0
    %112 = vmatpush.msra.mxu0 0.0
    %113 = vmatpush.msra.mxu0 0.0
    %114 = vmatpush.msra.mxu0 0.0
    %115 = vmatpush.msra.mxu0 0.0
    %116 = vmatpush.msra.mxu0 0.0
    %117 = vmatpush.msra.mxu0 0.0
    %118 = vmatpush.msra.mxu0 0.0
    %119 = vmatpush.msra.mxu0 0.0
    %120 = vmatpush.msra.mxu0 %v103
    %121 = vmatpush.msra.mxu0 %v102
    %122 = vmatpush.msra.mxu0 %v101
    %123 = vmatpush.msra.mxu0 %v100
    %124 = vmatmul.f32.gmra.mxu0 %v106
    %v125 = vpop.f32.mrf.mxu0
    %v126 = vadd.f32 0.0, %v125
    %127 = vdwg.mxu0
    %v129 = vsel %vm104, %v94, 0
    %131 = vmatpush.msra.mxu0 0.0
    %132 = vmatpush.msra.mxu0 0.0
    %133 = vmatpush.msra.mxu0 0.0
    %134 = vmatpush.msra.mxu0 0.0
    %135 = vmatpush.msra.mxu0 0.0
    %136 = vmatpush.msra.mxu0 0.0
    %137 = vmatpush.msra.mxu0 0.0
    %138 = vmatpush.msra.mxu0 0.0
    %139 = vmatpush.msra.mxu0 0.0
    %140 = vmatpush.msra.mxu0 0.0
    %141 = vmatpush.msra.mxu0 0.0
    %142 = vmatpush.msra.mxu0 0.0
    %143 = vmatpush.msra.mxu0 %v98
    %144 = vmatpush.msra.mxu0 %v97
    %145 = vmatpush.msra.mxu0 %v96
    %146 = vmatpush.msra.mxu0 %v95
    %147 = vmatmul.f32.gmra.mxu0 %v129
    %v148 = vpop.f32.mrf.mxu0
    %v149 = vadd.f32 %v126, %v148
    %150 = vdwg.mxu0
    %v151 = vld [vmem:[#allocation7] sm:$0x3]
    %v152 = vld [vmem:[#allocation10 + $0x40] sm:$0xff]
    %v153 = vld [vmem:[#allocation10 + $0x48] sm:$0xff]
    %v154 = vld [vmem:[#allocation10 + $0x50] sm:$0xff]
    %v155 = vld [vmem:[#allocation10 + $0x58] sm:$0xff]
    %v157 = vsel %vm104, %v151, 0
    %159 = vmatpush.msra.mxu0 0.0
    %160 = vmatpush.msra.mxu0 0.0
    %161 = vmatpush.msra.mxu0 0.0
    %162 = vmatpush.msra.mxu0 0.0
    %163 = vmatpush.msra.mxu0 0.0
    %164 = vmatpush.msra.mxu0 0.0
    %165 = vmatpush.msra.mxu0 0.0
    %166 = vmatpush.msra.mxu0 0.0
    %167 = vmatpush.msra.mxu0 0.0
    %168 = vmatpush.msra.mxu0 0.0
    %169 = vmatpush.msra.mxu0 0.0
    %170 = vmatpush.msra.mxu0 0.0
    %171 = vmatpush.msra.mxu0 %v155
    %172 = vmatpush.msra.mxu0 %v154
    %173 = vmatpush.msra.mxu0 %v153
    %174 = vmatpush.msra.mxu0 %v152
    %175 = vmatmul.f32.gmra.mxu0 %v157
    %v176 = vpop.f32.mrf.mxu0
    %v177 = vadd.f32 0.0, %v176
    %178 = vdwg.mxu0
    %v179 = vadd.f32 %v149, %v177
    %v180 = vld [vmem:[#allocation8] sm:$0x3]
    %v181 = vld [vmem:[#allocation10 + $0x60] sm:$0xff]
    %v182 = vld [vmem:[#allocation10 + $0x68] sm:$0xff]
    %v183 = vld [vmem:[#allocation10 + $0x70] sm:$0xff]
    %v184 = vld [vmem:[#allocation10 + $0x78] sm:$0xff]
    %v186 = vsel %vm104, %v180, 0
    %188 = vmatpush.msra.mxu0 0.0
    %189 = vmatpush.msra.mxu0 0.0
    %190 = vmatpush.msra.mxu0 0.0
    %191 = vmatpush.msra.mxu0 0.0
    %192 = vmatpush.msra.mxu0 0.0
    %193 = vmatpush.msra.mxu0 0.0
    %194 = vmatpush.msra.mxu0 0.0
    %195 = vmatpush.msra.mxu0 0.0
    %196 = vmatpush.msra.mxu0 0.0
    %197 = vmatpush.msra.mxu0 0.0
    %198 = vmatpush.msra.mxu0 0.0
    %199 = vmatpush.msra.mxu0 0.0
    %200 = vmatpush.msra.mxu0 %v184
    %201 = vmatpush.msra.mxu0 %v183
    %202 = vmatpush.msra.mxu0 %v182
    %203 = vmatpush.msra.mxu0 %v181
    %204 = vmatmul.f32.gmra.mxu0 %v186
    %v205 = vpop.f32.mrf.mxu0
    %v206 = vadd.f32 0.0, %v205
    %207 = vdwg.mxu0
    %v208 = vadd.f32 %v179, %v206
    %v209 = vld [vmem:[%s5] sm:$0x1]
    %v211 = vperm.slane %v209, 0
    %v213 = vadd.f32 %v208, %v211
    %vm214 = vcmp.ge.f32.partialorder %v213, 0.0
    %v215 = vmul.f32 %v213, 0.01
    %v216 = vsel %vm214, %v213, %v215
    %s217 = scalar_lea.vmem [#allocation10], 128
    %v218 = vld [vmem:[%s217] sm:$0xff]
    %v219 = vld [vmem:[%s217 + $0x8] sm:$0xff]
    %v220 = vld [vmem:[%s217 + $0x10] sm:$0xff]
    %v221 = vld [vmem:[%s217 + $0x18] sm:$0xff]
    %v222 = vld [vmem:[%s217 + $0x20] sm:$0xff]
    %v223 = vld [vmem:[%s217 + $0x28] sm:$0xff]
    %v224 = vld [vmem:[%s217 + $0x30] sm:$0xff]
    %v225 = vld [vmem:[%s217 + $0x38] sm:$0xff]
    %v226 = vld [vmem:[%s217 + $0x40] sm:$0xff]
    %v227 = vld [vmem:[%s217 + $0x48] sm:$0xff]
    %v228 = vld [vmem:[%s217 + $0x50] sm:$0xff]
    %v229 = vld [vmem:[%s217 + $0x58] sm:$0xff]
    %v230 = vld [vmem:[%s217 + $0x60] sm:$0xff]
    %v231 = vld [vmem:[%s217 + $0x68] sm:$0xff]
    %v232 = vld [vmem:[%s217 + $0x70] sm:$0xff]
    %v233 = vld [vmem:[%s217 + $0x78] sm:$0xff]
    %s234 = scalar_lea.vmem %s5, 1
    %v235 = vld [vmem:[%s234] sm:$0x1]
    %v237 = vperm.slane %v235, 0
    %239 = vmatpush.msra.mxu0 %v233
    %240 = vmatpush.msra.mxu0 %v232
    %241 = vmatpush.msra.mxu0 %v231
    %242 = vmatpush.msra.mxu0 %v230
    %243 = vmatpush.msra.mxu0 %v229
    %244 = vmatpush.msra.mxu0 %v228
    %245 = vmatpush.msra.mxu0 %v227
    %246 = vmatpush.msra.mxu0 %v226
    %247 = vmatpush.msra.mxu0 %v225
    %248 = vmatpush.msra.mxu0 %v224
    %249 = vmatpush.msra.mxu0 %v223
    %250 = vmatpush.msra.mxu0 %v222
    %251 = vmatpush.msra.mxu0 %v221
    %252 = vmatpush.msra.mxu0 %v220
    %253 = vmatpush.msra.mxu0 %v219
    %254 = vmatpush.msra.mxu0 %v218
    %255 = vmatmul.f32.gmra.mxu0 %v216
    %v256 = vpop.f32.mrf.mxu0
    %v257 = vadd.f32 %v237, %v256
    %258 = vdwg.mxu0
    %vm259 = vcmp.ge.f32.partialorder %v257, 0.0
    %v260 = vmul.f32 %v257, 0.01
    %v261 = vsel %vm259, %v257, %v260
    %s262 = scalar_lea.vmem [#allocation10], 256
    %v263 = vld [vmem:[%s262] sm:$0xff]
    %v264 = vld [vmem:[%s262 + $0x8] sm:$0xff]
    %v265 = vld [vmem:[%s262 + $0x10] sm:$0xff]
    %v266 = vld [vmem:[%s262 + $0x18] sm:$0xff]
    %v267 = vld [vmem:[%s262 + $0x20] sm:$0xff]
    %v268 = vld [vmem:[%s262 + $0x28] sm:$0xff]
    %v269 = vld [vmem:[%s262 + $0x30] sm:$0xff]
    %v270 = vld [vmem:[%s262 + $0x38] sm:$0xff]
    %v271 = vld [vmem:[%s262 + $0x40] sm:$0xff]
    %v272 = vld [vmem:[%s262 + $0x48] sm:$0xff]
    %v273 = vld [vmem:[%s262 + $0x50] sm:$0xff]
    %v274 = vld [vmem:[%s262 + $0x58] sm:$0xff]
    %v275 = vld [vmem:[%s262 + $0x60] sm:$0xff]
    %v276 = vld [vmem:[%s262 + $0x68] sm:$0xff]
    %v277 = vld [vmem:[%s262 + $0x70] sm:$0xff]
    %v278 = vld [vmem:[%s262 + $0x78] sm:$0xff]
    %s279 = scalar_lea.vmem %s5, 2
    %v280 = vld [vmem:[%s279] sm:$0x1]
    %v282 = vperm.slane %v280, 0
    %284 = vmatpush.msra.mxu0 %v278
    %285 = vmatpush.msra.mxu0 %v277
    %286 = vmatpush.msra.mxu0 %v276
    %287 = vmatpush.msra.mxu0 %v275
    %288 = vmatpush.msra.mxu0 %v274
    %289 = vmatpush.msra.mxu0 %v273
    %290 = vmatpush.msra.mxu0 %v272
    %291 = vmatpush.msra.mxu0 %v271
    %292 = vmatpush.msra.mxu0 %v270
    %293 = vmatpush.msra.mxu0 %v269
    %294 = vmatpush.msra.mxu0 %v268
    %295 = vmatpush.msra.mxu0 %v267
    %296 = vmatpush.msra.mxu0 %v266
    %297 = vmatpush.msra.mxu0 %v265
    %298 = vmatpush.msra.mxu0 %v264
    %299 = vmatpush.msra.mxu0 %v263
    %300 = vmatmul.f32.gmra.mxu0 %v261
    %v301 = vpop.f32.mrf.mxu0
    %v302 = vadd.f32 %v282, %v301
    %303 = vdwg.mxu0
    %v304 = vxor.u32 %v302, 2147483648
    %v305 = vmul.f32 %v304, 1.442695
    %v306 = vpow.pop %v305
    %v307 = vadd.f32 %v306, 1.0
    %v308 = vrcp.pop %v307
    %v309 = vmul.f32 %v307, %v308
    %v310 = vsub.f32 1.0, %v309
    %v311 = vmul.f32 %v308, %v310
    %v312 = vadd.f32 %v308, %v311
    %vm313 = vweird.f32 %v307
    %vm314 = vweird.f32 %v308
    %vm315 = vmor %vm313, %vm314
    %v316 = vsel %vm315, %v308, %v312
    %v317 = vand.u32 2147483647, %v307
    %vm318 = vcmp.eq.f32.partialorder %v317, 8.507059e+37
    %v319 = vand.u32 %v307, 2147483648
    %v320 = vor.u32 1.1754944e-38, %v319
    %v321 = vsel %vm318, %v320, %v316
    %v322 = vmul.f32 1.0, %v321
    %323 = vst [vmem:[#allocation11] sm:$0x3] %v322
    // Predicated region
    $region46: #{tpu_custom_call.1} parent=1 // pred_check
      _
    $region47: #{tpu_custom_call.1} parent=1 // pred_check_branch
      %325 = sbr.rel (0) target = $region49
    $region48: #{tpu_custom_call.1} parent=1 // pred_region
      %327 = vsyncadd [#allocation4], 0
      %s329 = sshll.u32 [#allocation11], 4
      %s330 = int_to_ptr.vmem [resolvable:$true] %s329
      %s331 = sshll.u32 %s6, 4
      %s332 = int_to_ptr.hbm [resolvable:$true] %s331
      %334 = dma.vmem_to_hbm [thread:$0]  %s330, 32, %s332, [#allocation4]
    $region49: #{tpu_custom_call.1} parent=1 // pred_fallthru
      _
    // Predicated region
    $region50: #{tpu_custom_call.1} parent=1 // pred_check
      _
    $region51: #{tpu_custom_call.1} parent=1 // pred_check_branch
      %336 = sbr.rel (0) target = $region53
    $region52: #{tpu_custom_call.1} parent=1 // pred_region
      %338 = dma.done [#allocation4], 32
    $region53: #{tpu_custom_call.1} parent=1 // pred_fallthru
      _
    %339 = vsyncpa [#allocation3], 1
    %340 = vsyncpa [#allocation6], 1
    %341 = vsyncpa [#allocation9], 1
    %342 = vsyncpa [#allocation4], 1

</llo_original>
